<compile_context>
chip_gen: v5e
topology: v5e:2x2
jax: 0.10.0
libtpu: 0.0.40
codegen_flags: <defaults>
</compile_context>

<pallas_src>
import functools

import jax
import jax.numpy as jnp
from jax import lax
from jax.experimental import pallas as pl
from jax.experimental.pallas import tpu as pltpu

TEXT_EMBED_SIZE = 13          # config['text_embed_size']
AUDIO_POOLED_SIZE = 128       # AdaptiveAvgPool1d(128) output of pretrained_feature
NUM_CLASSES = 2               # config['num_classes']


def _my_loss_kernel(text_ref, audio_ref, wdt_ref, wda_ref, tgt_ref, out_ref, *,
                    total_rows, block_rows, steps_per_split):
    # text_ref : [bb, T]   f32 VMEM  (batch tile)
    # audio_ref: [bb, A]   f32 VMEM  (batch tile)
    # wdt_ref  : [1, T]    f32 VMEM  (w[1,:T]  - w[0,:T],  resident)
    # wda_ref  : [1, A]    f32 VMEM  (w[1,T:]  - w[0,T:],  resident)
    # tgt_ref  : [1, bb]   i32 VMEM  (targets, batch on lanes)
    # out_ref  : [1, 1]    f32 SMEM  (per-core-split partial sum, resident over axis 1)
    c = pl.program_id(0)          # core-split index ("parallel")
    i = pl.program_id(1)          # batch-tile step within the split ("arbitrary")

    @pl.when(i == 0)
    def _init():
        out_ref[0, 0] = jnp.float32(0.0)

    # Batch-on-lanes logit differences: d = x @ (w1 - w0)  ->  [1, bb]
    dn = (((1,), (1,)), ((), ()))
    d_text = lax.dot_general(wdt_ref[...], text_ref[...], dn,
                             preferred_element_type=jnp.float32)    # [1, bb]
    d_audio = lax.dot_general(wda_ref[...], audio_ref[...], dn,
                              preferred_element_type=jnp.float32)   # [1, bb]

    # sign = +1 for target 0, -1 for target 1  (targets assumed in {0, 1})
    sign = 1.0 - 2.0 * tgt_ref[...].astype(jnp.float32)             # [1, bb]

    # Tail mask from the *logical* tile index (extra / padded tiles contribute 0).
    tile = c * steps_per_split + i
    row = lax.broadcasted_iota(jnp.int32, (1, block_rows), 1) + tile * block_rows
    valid = row < total_rows                                         # [1, bb]

    def softplus(z):
        # numerically stable log(1 + exp(z))
        return jnp.maximum(z, 0.0) + jnp.log(1.0 + jnp.exp(-jnp.abs(z)))

    # Mask before the transcendental path so padded-row garbage never reaches it.
    z_t = jnp.where(valid, sign * d_text, 0.0)
    z_a = jnp.where(valid, sign * d_audio, 0.0)
    nll = jnp.where(valid, softplus(z_t) + softplus(z_a), 0.0)       # [1, bb]

    # Mean contribution (1/B is a compile-time constant); lane reduce + SMEM scalar.
    out_ref[0, 0] += jnp.sum(nll) * jnp.float32(1.0 / total_rows)


def my_loss(text_feature, audio_feature, target, fc_final_weight,
            text_embed_size=TEXT_EMBED_SIZE, block_rows=8192):
    """Pallas equivalent of MyLoss.forward.

    text_feature   : [B, text_embed_size] f32
    audio_feature  : [B, 128]             f32
    target         : [B] (or [B,1]) int   class indices in {0, 1}
    fc_final_weight: [2, text_embed_size + 128] f32  (model.fc_final[0].weight)
    """
    B, T = text_feature.shape
    A = audio_feature.shape[1]
    C, F_ = fc_final_weight.shape
    assert T == text_embed_size and F_ == T + A and C == NUM_CLASSES

    text_feature = text_feature.astype(jnp.float32)
    audio_feature = audio_feature.astype(jnp.float32)
    fc_final_weight = fc_final_weight.astype(jnp.float32)
    target = target.astype(jnp.int32).reshape(1, B)     # batch on the lane axis

    # One-time (~1 KiB) weight preprocessing, hoisted out of the per-step body:
    # 2-class logit-difference vectors, pre-split at the text/audio boundary so
    # the kernel never performs a lane-unaligned slice.
    w_diff = (fc_final_weight[1, :] - fc_final_weight[0, :]).reshape(1, F_)
    wd_text = w_diff[:, :T]         # [1, 13]
    wd_audio = w_diff[:, T:]        # [1, 128]

    # Batch tile: whole batch if small, else a lane-aligned tile (multiple of 128
    # so the [1, bb] target block satisfies the lane constraint).
    block_rows = max(128, (block_rows // 128) * 128)
    bb = B if B <= block_rows else block_rows
    total_tiles = pl.cdiv(B, bb)
    # v7x: shard batch tiles across both TensorCores via a leading parallel axis.
    num_splits = 2 if total_tiles >= 2 else 1
    steps_per_split = pl.cdiv(total_tiles, num_splits)
    grid = (num_splits, steps_per_split)

    def tile_idx(c, i):
        # Clamp so padded grid steps re-read the last real tile (fully masked in-kernel).
        return jnp.minimum(c * steps_per_split + i, total_tiles - 1)

    kernel = functools.partial(
        _my_loss_kernel,
        total_rows=B, block_rows=bb, steps_per_split=steps_per_split)

    cost = pl.CostEstimate(
        flops=2 * B * (T + A) + 10 * B,
        transcendentals=4 * B,
        bytes_accessed=B * (T + A + 1) * 4 + (T + A) * 4 + 8 * num_splits)

    partials = pl.pallas_call(
        kernel,
        out_shape=jax.ShapeDtypeStruct((num_splits, 1), jnp.float32),
        grid=grid,
        in_specs=[
            pl.BlockSpec((bb, T), lambda c, i: (tile_idx(c, i), 0)),   # text tile
            pl.BlockSpec((bb, A), lambda c, i: (tile_idx(c, i), 0)),   # audio tile
            pl.BlockSpec((1, T), lambda c, i: (0, 0)),                 # w-diff text, resident
            pl.BlockSpec((1, A), lambda c, i: (0, 0)),                 # w-diff audio, resident
            pl.BlockSpec((1, bb), lambda c, i: (0, tile_idx(c, i))),   # targets (lane axis)
        ],
        out_specs=pl.BlockSpec((1, 1), lambda c, i: (c, 0),
                               memory_space=pltpu.MemorySpace.SMEM),
        compiler_params=pltpu.CompilerParams(
            dimension_semantics=("parallel", "arbitrary"),
            vmem_limit_bytes=32 * 1024 * 1024),
        cost_estimate=cost,
    )(text_feature, audio_feature, wd_text, wd_audio, target)

    return jnp.sum(partials)


def _reference_loss(text_feature, audio_feature, target, weight,
                    text_embed_size=TEXT_EMBED_SIZE):
    # Pure-JAX reference (mirrors F.linear + nn.CrossEntropyLoss(reduction='mean')).
    def ce(logits, tgt):
        logp = jax.nn.log_softmax(logits, axis=-1)
        return -jnp.mean(jnp.take_along_axis(logp, tgt[:, None], axis=1))
    tgt = target.reshape(-1).astype(jnp.int32)
    pt = text_feature @ weight[:, :text_embed_size].T
    pa = audio_feature @ weight[:, text_embed_size:].T
    return ce(pt, tgt) + ce(pa, tgt)


if __name__ == "__main__":
    key = jax.random.PRNGKey(0)
    k1, k2, k3, k4 = jax.random.split(key, 4)

    fan_in = TEXT_EMBED_SIZE + AUDIO_POOLED_SIZE
    bound = 1.0 / jnp.sqrt(jnp.float32(fan_in))
    fc_final_weight = jax.random.uniform(
        k4, (NUM_CLASSES, fan_in), dtype=jnp.float32, minval=-bound, maxval=bound)

    # Case 1: the module's configured batch size (single tile, single grid step).
    B = 8  # config['batch_size']
    text_feature = jax.random.normal(k1, (B, TEXT_EMBED_SIZE), dtype=jnp.float32)
    audio_feature = jax.random.normal(k2, (B, AUDIO_POOLED_SIZE), dtype=jnp.float32)
    target = jax.random.randint(k3, (B,), 0, NUM_CLASSES, dtype=jnp.int32)

    loss = jax.block_until_ready(
        my_loss(text_feature, audio_feature, target, fc_final_weight))
    ref = _reference_loss(text_feature, audio_feature, target, fc_final_weight)
    assert jnp.allclose(loss, ref, rtol=1e-5, atol=1e-5), (loss, ref)

    # Case 2: multi-tile batch with a ragged tail — exercises the 2-D grid
    # (parallel core-split + arbitrary reduction), clamped index_map and masking.
    B2 = 300
    tf2 = jax.random.normal(k2, (B2, TEXT_EMBED_SIZE), dtype=jnp.float32)
    af2 = jax.random.normal(k1, (B2, AUDIO_POOLED_SIZE), dtype=jnp.float32)
    tg2 = jax.random.randint(k3, (B2,), 0, NUM_CLASSES, dtype=jnp.int32)
    loss2 = jax.block_until_ready(
        my_loss(tf2, af2, tg2, fc_final_weight, block_rows=128))
    ref2 = _reference_loss(tf2, af2, tg2, fc_final_weight)
    assert jnp.allclose(loss2, ref2, rtol=1e-5, atol=1e-5), (loss2, ref2)

    print("KERNEL_OK")
</pallas_src>

<mosaic_0001>
module attributes {stable_mosaic.version = 11 : i64} {
  func.func @_my_loss_kernel(%arg0: i32, %arg1: i32, %arg2: memref<8x13xf32, #tpu.memory_space<vmem>>, %arg3: memref<8x128xf32, #tpu.memory_space<vmem>>, %arg4: memref<1x13xf32, #tpu.memory_space<vmem>>, %arg5: memref<1x128xf32, #tpu.memory_space<vmem>>, %arg6: memref<1x8xi32, #tpu.memory_space<vmem>>, %arg7: memref<1x1xf32, #tpu.memory_space<smem>>) attributes {dimension_semantics = [#tpu.dimension_semantics<parallel>, #tpu.dimension_semantics<arbitrary>], iteration_bounds = array<i64: 1, 1>, scalar_prefetch = 0 : i64, scratch_operands = 0 : i64, tpu.core_type = #tpu.core_type<tc>, window_params = [{transform_indices = @transform_0, window_bounds = array<i64: 8, 13>}, {transform_indices = @transform_1, window_bounds = array<i64: 8, 128>}, {pipeline_mode = #tpu.pipeline_mode<synchronous>, transform_indices = @transform_2, window_bounds = array<i64: 1, 13>}, {pipeline_mode = #tpu.pipeline_mode<synchronous>, transform_indices = @transform_3, window_bounds = array<i64: 1, 128>}, {transform_indices = @transform_4, window_bounds = array<i64: 1, 8>}, {transform_indices = @transform_5, window_bounds = array<i64: 1, 1>}]} {
    %c0_i32 = arith.constant 0 : i32
    %0 = arith.cmpi eq, %arg1, %c0_i32 : i32
    %1 = arith.extui %0 : i1 to i32
    %c0_i32_0 = arith.constant 0 : i32
    %2 = arith.cmpi ne, %1, %c0_i32_0 : i32
    scf.if %2 {
      %cst_29 = arith.constant 0.000000e+00 : f32
      %c0_30 = arith.constant 0 : index
      %c0_31 = arith.constant 0 : index
      %60 = memref.load %arg7[%c0_30, %c0_31] : memref<1x1xf32, #tpu.memory_space<smem>>
      memref.store %cst_29, %arg7[%c0_30, %c0_31] : memref<1x1xf32, #tpu.memory_space<smem>>
    } else {
    }
    %c0 = arith.constant 0 : index
    %c0_1 = arith.constant 0 : index
    %3 = vector.load %arg4[%c0, %c0_1] : memref<1x13xf32, #tpu.memory_space<vmem>>, vector<1x13xf32>
    %c0_2 = arith.constant 0 : index
    %c0_3 = arith.constant 0 : index
    %4 = vector.load %arg2[%c0_2, %c0_3] : memref<8x13xf32, #tpu.memory_space<vmem>>, vector<8x13xf32>
    %cst = arith.constant dense<0.000000e+00> : vector<1x8xf32>
    %5 = tpu.matmul %3, %4, %cst {dimension_numbers = #tpu.dot_dimension_numbers<[1], [1], [0], [0], [0, 0, 1, 0], [], []>} : vector<1x13xf32>, vector<8x13xf32>, vector<1x8xf32> -> vector<1x8xf32>
    %c0_4 = arith.constant 0 : index
    %c0_5 = arith.constant 0 : index
    %6 = vector.load %arg5[%c0_4, %c0_5] : memref<1x128xf32, #tpu.memory_space<vmem>>, vector<1x128xf32>
    %c0_6 = arith.constant 0 : index
    %c0_7 = arith.constant 0 : index
    %7 = vector.load %arg3[%c0_6, %c0_7] : memref<8x128xf32, #tpu.memory_space<vmem>>, vector<8x128xf32>
    %cst_8 = arith.constant dense<0.000000e+00> : vector<1x8xf32>
    %8 = tpu.matmul %6, %7, %cst_8 {dimension_numbers = #tpu.dot_dimension_numbers<[1], [1], [0], [0], [0, 0, 1, 0], [], []>} : vector<1x128xf32>, vector<8x128xf32>, vector<1x8xf32> -> vector<1x8xf32>
    %c0_9 = arith.constant 0 : index
    %c0_10 = arith.constant 0 : index
    %9 = vector.load %arg6[%c0_9, %c0_10] : memref<1x8xi32, #tpu.memory_space<vmem>>, vector<1x8xi32>
    %10 = arith.sitofp %9 : vector<1x8xi32> to vector<1x8xf32>
    %cst_11 = arith.constant 2.000000e+00 : f32
    %11 = vector.broadcast %cst_11 : f32 to vector<1x8xf32>
    %12 = arith.mulf %11, %10 : vector<1x8xf32>
    %cst_12 = arith.constant 1.000000e+00 : f32
    %13 = vector.broadcast %cst_12 : f32 to vector<1x8xf32>
    %14 = arith.subf %13, %12 : vector<1x8xf32>
    %c1_i32 = arith.constant 1 : i32
    %15 = arith.muli %arg0, %c1_i32 : i32
    %16 = arith.addi %15, %arg1 : i32
    %17 = tpu.iota {dimensions = array<i32: 1>} : vector<1x8xi32>
    %c8_i32 = arith.constant 8 : i32
    %18 = arith.muli %16, %c8_i32 : i32
    %19 = vector.broadcast %18 : i32 to vector<1x8xi32>
    %20 = arith.addi %17, %19 : vector<1x8xi32>
    %c8_i32_13 = arith.constant 8 : i32
    %21 = vector.broadcast %c8_i32_13 : i32 to vector<1x8xi32>
    %22 = arith.cmpi slt, %20, %21 : vector<1x8xi32>
    %23 = arith.mulf %14, %5 : vector<1x8xf32>
    %cst_14 = arith.constant 0.000000e+00 : f32
    %24 = vector.broadcast %cst_14 : f32 to vector<1x8xf32>
    %25 = arith.select %22, %23, %24 : vector<1x8xi1>, vector<1x8xf32>
    %26 = arith.mulf %14, %8 : vector<1x8xf32>
    %cst_15 = arith.constant 0.000000e+00 : f32
    %27 = vector.broadcast %cst_15 : f32 to vector<1x8xf32>
    %28 = arith.select %22, %26, %27 : vector<1x8xi1>, vector<1x8xf32>
    %cst_16 = arith.constant 0.000000e+00 : f32
    %29 = vector.broadcast %cst_16 : f32 to vector<1x8xf32>
    %30 = arith.maximumf %25, %29 : vector<1x8xf32>
    %31 = math.absf %25 : vector<1x8xf32>
    %cst_17 = arith.constant 0.000000e+00 : f32
    %32 = vector.broadcast %cst_17 : f32 to vector<1x8xf32>
    %33 = arith.subf %32, %31 : vector<1x8xf32>
    %34 = math.exp %33 : vector<1x8xf32>
    %cst_18 = arith.constant 1.000000e+00 : f32
    %35 = vector.broadcast %cst_18 : f32 to vector<1x8xf32>
    %36 = arith.addf %35, %34 : vector<1x8xf32>
    %37 = math.log %36 : vector<1x8xf32>
    %38 = arith.addf %30, %37 : vector<1x8xf32>
    %cst_19 = arith.constant 0.000000e+00 : f32
    %39 = vector.broadcast %cst_19 : f32 to vector<1x8xf32>
    %40 = arith.maximumf %28, %39 : vector<1x8xf32>
    %41 = math.absf %28 : vector<1x8xf32>
    %cst_20 = arith.constant 0.000000e+00 : f32
    %42 = vector.broadcast %cst_20 : f32 to vector<1x8xf32>
    %43 = arith.subf %42, %41 : vector<1x8xf32>
    %44 = math.exp %43 : vector<1x8xf32>
    %cst_21 = arith.constant 1.000000e+00 : f32
    %45 = vector.broadcast %cst_21 : f32 to vector<1x8xf32>
    %46 = arith.addf %45, %44 : vector<1x8xf32>
    %47 = math.log %46 : vector<1x8xf32>
    %48 = arith.addf %40, %47 : vector<1x8xf32>
    %49 = arith.addf %38, %48 : vector<1x8xf32>
    %cst_22 = arith.constant 0.000000e+00 : f32
    %50 = vector.broadcast %cst_22 : f32 to vector<1x8xf32>
    %51 = arith.select %22, %49, %50 : vector<1x8xi1>, vector<1x8xf32>
    %c0_23 = arith.constant 0 : index
    %c0_24 = arith.constant 0 : index
    %52 = memref.load %arg7[%c0_23, %c0_24] : memref<1x1xf32, #tpu.memory_space<smem>>
    %53 = vector.shape_cast %51 : vector<1x8xf32> to vector<1x1x8xf32>
    %cst_25 = arith.constant dense<0.000000e+00> : vector<1xf32>
    %54 = vector.multi_reduction <add>, %53, %cst_25 [1, 2] : vector<1x1x8xf32> to vector<1xf32>
    %55 = vector.shape_cast %54 : vector<1xf32> to vector<1x1x1xf32>
    %56 = vector.extract %55[0, 0, 0] : f32 from vector<1x1x1xf32>
    %cst_26 = arith.constant 1.250000e-01 : f32
    %57 = arith.mulf %56, %cst_26 : f32
    %58 = arith.addf %52, %57 : f32
    %c0_27 = arith.constant 0 : index
    %c0_28 = arith.constant 0 : index
    %59 = memref.load %arg7[%c0_27, %c0_28] : memref<1x1xf32, #tpu.memory_space<smem>>
    memref.store %58, %arg7[%c0_27, %c0_28] : memref<1x1xf32, #tpu.memory_space<smem>>
    return
  }
  func.func @transform_0(%arg0: i32, %arg1: i32) -> (i32, i32) {
    %c1_i32 = arith.constant 1 : i32
    %0 = arith.muli %arg0, %c1_i32 : i32
    %1 = arith.addi %0, %arg1 : i32
    %c0_i32 = arith.constant 0 : i32
    %2 = arith.minsi %1, %c0_i32 : i32
    %c0_i32_0 = arith.constant 0 : i32
    %c0_i32_1 = arith.constant 0 : i32
    return %2, %c0_i32_0 : i32, i32
  }
  func.func @transform_1(%arg0: i32, %arg1: i32) -> (i32, i32) {
    %c1_i32 = arith.constant 1 : i32
    %0 = arith.muli %arg0, %c1_i32 : i32
    %1 = arith.addi %0, %arg1 : i32
    %c0_i32 = arith.constant 0 : i32
    %2 = arith.minsi %1, %c0_i32 : i32
    %c0_i32_0 = arith.constant 0 : i32
    %c0_i32_1 = arith.constant 0 : i32
    return %2, %c0_i32_0 : i32, i32
  }
  func.func @transform_2(%arg0: i32, %arg1: i32) -> (i32, i32) {
    %c0_i32 = arith.constant 0 : i32
    %c0_i32_0 = arith.constant 0 : i32
    %c0_i32_1 = arith.constant 0 : i32
    return %c0_i32, %c0_i32_0 : i32, i32
  }
  func.func @transform_3(%arg0: i32, %arg1: i32) -> (i32, i32) {
    %c0_i32 = arith.constant 0 : i32
    %c0_i32_0 = arith.constant 0 : i32
    %c0_i32_1 = arith.constant 0 : i32
    return %c0_i32, %c0_i32_0 : i32, i32
  }
  func.func @transform_4(%arg0: i32, %arg1: i32) -> (i32, i32) {
    %c1_i32 = arith.constant 1 : i32
    %0 = arith.muli %arg0, %c1_i32 : i32
    %1 = arith.addi %0, %arg1 : i32
    %c0_i32 = arith.constant 0 : i32
    %2 = arith.minsi %1, %c0_i32 : i32
    %c0_i32_0 = arith.constant 0 : i32
    %c0_i32_1 = arith.constant 0 : i32
    return %c0_i32_0, %2 : i32, i32
  }
  func.func @transform_5(%arg0: i32, %arg1: i32) -> (i32, i32) {
    %c0_i32 = arith.constant 0 : i32
    %c0_i32_0 = arith.constant 0 : i32
    return %arg0, %c0_i32 : i32, i32
  }
}

</mosaic_0001>

<llo_original>
// kernel: tpu_custom_call.1
$region0: #{tpu_custom_call.1}
  #allocation0 [shape = 'u32[]', space=smem, size = 0x4, offset = 0x4, fixed_abs, tag = 'smem constant byte address 0x4 - core index']
  #allocation1 [shape = 'u32[72,128]{1,0:T(1,128)}', space=vmem, size = 0x9000, scoped, tag = 'internal scratch']
  %s0 = inlined_call_operand.hbm [shape: f32[8,13], index: 0, kind: input, shape index: {}]
  %s1 = inlined_call_operand.hbm [shape: f32[8,128], index: 1, kind: input, shape index: {}]
  %s2 = inlined_call_operand.vmem [shape: f32[1,13], index: 2, kind: input, shape index: {}]
  %s3 = inlined_call_operand.vmem [shape: f32[1,128], index: 3, kind: input, shape index: {}]
  %s4 = inlined_call_operand.vmem [shape: s32[1,8], index: 4, kind: input, shape index: {}]
  %s5 = inlined_call_operand.hbm [shape: f32[1,1], index: 5, kind: output, shape index: {}]
  %s6 = sld [smem:[#allocation0]]
  $region42: #{tpu_custom_call.1} parent=0
    _
  %s8 = ssub.s32 1, %s6
  %s9 = scalar_select 0, %s8, %s6
  $region1: #{tpu_custom_call.1} parent=0
    #allocation2 [shape = 'u8[4096]{0}', space=vmem, size = 0x1000, scoped, tag = 'input window, operand 0, single buffered']
    #allocation3 [shape = 's32[1]{0}', space=sflag, size = 0x4, scoped, tag = 'scoped memory for tpu_custom_call.1']
    #allocation4 [shape = 's32[1]{0}', space=sflag, size = 0x4, scoped, tag = 'scoped memory for tpu_custom_call.1']
    #allocation5 [shape = 'u8[4096]{0}', space=vmem, size = 0x1000, scoped, tag = 'input window, operand 1, single buffered']
    #allocation6 [shape = 's32[1]{0}', space=sflag, size = 0x4, scoped, tag = 'scoped memory for tpu_custom_call.1']
    #allocation7 [shape = 'u8[512]{0}', space=smem, size = 0x200, scoped, tag = 'output window, operand 0, single buffered']
    %10 = vsyncpa [#allocation3], 0
    %11 = vsyncpa [#allocation6], 0
    %12 = vsyncpa [#allocation4], 0
    // Predicated region
    $region2: #{tpu_custom_call.1} parent=1 // pred_check
      _
    $region3: #{tpu_custom_call.1} parent=1 // pred_check_branch
      %14 = sbr.rel (0) target = $region5
    $region4: #{tpu_custom_call.1} parent=1 // pred_region
      %s15 = sadd.s32 0, 0
      %p16 = scmp.lt.s32.totalorder %s15, 0
      %s17 = scalar_select %p16, %s15, 0
      %19 = vsyncadd [#allocation3], 0
      %s20 = smul.addr %s17, 8
      %s21 = scalar_lea.hbm %s0, %s20
      %s23 = sshll.u32 %s21, 4
      %s24 = int_to_ptr.hbm [resolvable:$true] %s23
      %s25 = sshll.u32 [#allocation2], 4
      %s26 = int_to_ptr.vmem [resolvable:$true] %s25
      %28 = dma.hbm_to_vmem [thread:$0]  %s24, 128, %s26, [#allocation3]
    $region5: #{tpu_custom_call.1} parent=1 // pred_fallthru
      _
    // Predicated region
    $region6: #{tpu_custom_call.1} parent=1 // pred_check
      _
    $region7: #{tpu_custom_call.1} parent=1 // pred_check_branch
      %30 = sbr.rel (0) target = $region9
    $region8: #{tpu_custom_call.1} parent=1 // pred_region
      %s31 = sadd.s32 0, 0
      %p32 = scmp.lt.s32.totalorder %s31, 0
      %s33 = scalar_select %p32, %s31, 0
      %35 = vsyncadd [#allocation6], 0
      %s36 = smul.addr %s33, 8
      %s37 = scalar_lea.hbm %s1, %s36
      %s39 = sshll.u32 %s37, 4
      %s40 = int_to_ptr.hbm [resolvable:$true] %s39
      %s41 = sshll.u32 [#allocation5], 4
      %s42 = int_to_ptr.vmem [resolvable:$true] %s41
      %44 = dma.hbm_to_vmem [thread:$0]  %s40, 128, %s42, [#allocation6]
    $region9: #{tpu_custom_call.1} parent=1 // pred_fallthru
      _
    // Predicated region
    $region10: #{tpu_custom_call.1} parent=1 // pred_check
      _
    $region11: #{tpu_custom_call.1} parent=1 // pred_check_branch
      %46 = sbr.rel (0) target = $region13
    $region12: #{tpu_custom_call.1} parent=1 // pred_region
      _
    $region13: #{tpu_custom_call.1} parent=1 // pred_fallthru
      _
    // Predicated region
    $region14: #{tpu_custom_call.1} parent=1 // pred_check
      _
    $region15: #{tpu_custom_call.1} parent=1 // pred_check_branch
      %48 = sbr.rel (0) target = $region17
    $region16: #{tpu_custom_call.1} parent=1 // pred_region
      _
    $region17: #{tpu_custom_call.1} parent=1 // pred_fallthru
      _
    // Predicated region
    $region18: #{tpu_custom_call.1} parent=1 // pred_check
      _
    $region19: #{tpu_custom_call.1} parent=1 // pred_check_branch
      %50 = sbr.rel (0) target = $region21
    $region20: #{tpu_custom_call.1} parent=1 // pred_region
      %s51 = sadd.s32 0, 0
      %p52 = scmp.lt.s32.totalorder %s51, 0
      %s53 = scalar_select %p52, %s51, 0
      %p54 = scmp.lt.s32.totalorder %s53, 0
      %s55 = scalar_select %p54, %s53, 0
      %s56 = scalar_lea.vmem %s4, %s55
      %s57 = sadd.s32 0, 0
      %p58 = scmp.lt.s32.totalorder %s57, 0
      %s59 = scalar_select %p58, %s57, 0
    $region21: #{tpu_custom_call.1} parent=1 // pred_fallthru
      _
    // Predicated region
    $region22: #{tpu_custom_call.1} parent=1 // pred_check
      _
    $region23: #{tpu_custom_call.1} parent=1 // pred_check_branch
      %61 = sbr.rel (0) target = $region25
    $region24: #{tpu_custom_call.1} parent=1 // pred_region
      %63 = dma.done [#allocation3], 128
    $region25: #{tpu_custom_call.1} parent=1 // pred_fallthru
      _
    // Predicated region
    $region26: #{tpu_custom_call.1} parent=1 // pred_check
      _
    $region27: #{tpu_custom_call.1} parent=1 // pred_check_branch
      %65 = sbr.rel (0) target = $region29
    $region28: #{tpu_custom_call.1} parent=1 // pred_region
      %67 = dma.done [#allocation6], 128
    $region29: #{tpu_custom_call.1} parent=1 // pred_fallthru
      _
    %s68 = sadd.s32 0, 0
    %p69 = scmp.lt.s32.totalorder %s68, 0
    %s70 = scalar_select %p69, %s68, 0
    %p71 = scmp.lt.s32.totalorder %s70, 0
    %s72 = scalar_select %p71, %s70, 0
    %s73 = scalar_lea.vmem %s4, %s72
    %s74 = sadd.s32 0, 0
    %p75 = scmp.lt.s32.totalorder %s74, 0
    %s76 = scalar_select %p75, %s74, 0
    %s77 = sadd.s32 0, 0
    %p78 = scmp.lt.s32.totalorder %s77, 0
    %s79 = scalar_select %p78, %s77, 0
    %s80 = sadd.s32 0, 0
    %p81 = scmp.lt.s32.totalorder %s80, 0
    %s82 = scalar_select %p81, %s80, 0
    %p83 = scmp.lt.s32.totalorder %s82, 0
    %s84 = scalar_select %p83, %s82, 0
    %s85 = scalar_lea.vmem %s4, %s84
    %s86 = sadd.s32 0, 0
    %p87 = scmp.lt.s32.totalorder %s86, 0
    %s88 = scalar_select %p87, %s86, 0
    %p89 = scmp.eq.s32.totalorder 0, 0
    // Predicated region
    $region30: #{tpu_custom_call.1} parent=1 // pred_check
      %p90 = pneg %p89
    $region31: #{tpu_custom_call.1} parent=1 // pred_check_branch
      %92 = sbr.rel (%p90) target = $region33
    $region32: #{tpu_custom_call.1} parent=1 // pred_region
      %s93 = scalar_lea.smem [#allocation7], 0
      %94 = sst [smem:[%s93]] 0.0
    $region33: #{tpu_custom_call.1} parent=1 // pred_fallthru
      _
    %v95 = vld [vmem:[%s2] sm:$0x1]
    %v96 = vld [vmem:[#allocation2] sm:$0xff]
    %vm97 = vcmask 105472
    %v99 = vsel %vm97, %v95, 0
    %v102 = vsel %vm97, %v96, 0
    %104 = vmatpush.xpose.msra.mxu0 0.0
    %105 = vmatpush.xpose.msra.mxu0 0.0
    %106 = vmatpush.xpose.msra.mxu0 0.0
    %107 = vmatpush.xpose.msra.mxu0 0.0
    %108 = vmatpush.xpose.msra.mxu0 0.0
    %109 = vmatpush.xpose.msra.mxu0 0.0
    %110 = vmatpush.xpose.msra.mxu0 0.0
    %111 = vmatpush.xpose.msra.mxu0 0.0
    %112 = vmatpush.xpose.msra.mxu0 0.0
    %113 = vmatpush.xpose.msra.mxu0 0.0
    %114 = vmatpush.xpose.msra.mxu0 0.0
    %115 = vmatpush.xpose.msra.mxu0 0.0
    %116 = vmatpush.xpose.msra.mxu0 0.0
    %117 = vmatpush.xpose.msra.mxu0 0.0
    %118 = vmatpush.xpose.msra.mxu0 0.0
    %119 = vmatpush.xpose.msra.mxu0 %v102
    %120 = vmatmul.f32.gmra.mxu0 %v99
    %v121 = vpop.f32.mrf.mxu0
    %v122 = vadd.f32 0.0, %v121
    %123 = vdwg.mxu0
    %v124 = vld [vmem:[%s3] sm:$0x1]
    %v125 = vld [vmem:[#allocation5] sm:$0xff]
    %126 = vmatpush.xpose.msra.mxu0 0.0
    %127 = vmatpush.xpose.msra.mxu0 0.0
    %128 = vmatpush.xpose.msra.mxu0 0.0
    %129 = vmatpush.xpose.msra.mxu0 0.0
    %130 = vmatpush.xpose.msra.mxu0 0.0
    %131 = vmatpush.xpose.msra.mxu0 0.0
    %132 = vmatpush.xpose.msra.mxu0 0.0
    %133 = vmatpush.xpose.msra.mxu0 0.0
    %134 = vmatpush.xpose.msra.mxu0 0.0
    %135 = vmatpush.xpose.msra.mxu0 0.0
    %136 = vmatpush.xpose.msra.mxu0 0.0
    %137 = vmatpush.xpose.msra.mxu0 0.0
    %138 = vmatpush.xpose.msra.mxu0 0.0
    %139 = vmatpush.xpose.msra.mxu0 0.0
    %140 = vmatpush.xpose.msra.mxu0 0.0
    %141 = vmatpush.xpose.msra.mxu0 %v125
    %142 = vmatmul.f32.gmra.mxu0 %v124
    %v143 = vpop.f32.mrf.mxu0
    %v144 = vadd.f32 0.0, %v143
    %145 = vdwg.mxu0
    %v146 = vld [vmem:[%s85] sm:$0x1]
    %v147 = vcvt.s32.f32 %v146
    %v148 = vmul.f32 %v147, 2.0
    %v149 = vsub.f32 1.0, %v148
    %s150 = sadd.s32 0, 0
    %v151 = vlaneseq
    %v152 = vand.u32 %v151, 127
    %s153 = smul.u32 %s150, 8
    %v154 = vstv %s153
    %v155 = vadd.s32 %v152, %v154
    %vm156 = vcmp.lt.s32.totalorder %v155, 8
    %v157 = vmul.f32 %v149, %v122
    %v158 = vsel %vm156, %v157, 0.0
    %v159 = vmul.f32 %v149, %v144
    %v160 = vsel %vm156, %v159, 0.0
    %v161 = vmax.f32 %v158, 0.0
    %v162 = vand.u32 2147483647, %v158
    %v163 = vsub.f32 0.0, %v162
    %v164 = vmul.f32 %v163, 1.442695
    %v165 = vpow.pop %v164
    %v166 = vadd.f32 %v165, 1.0
    %v167 = vlog2.pop %v166
    %v168 = vmul.f32 %v167, 0.6931472
    %v169 = vadd.f32 %v161, %v168
    %v170 = vmax.f32 %v160, 0.0
    %v171 = vand.u32 2147483647, %v160
    %v172 = vsub.f32 0.0, %v171
    %v173 = vmul.f32 %v172, 1.442695
    %v174 = vpow.pop %v173
    %v175 = vadd.f32 %v174, 1.0
    %v176 = vlog2.pop %v175
    %v177 = vmul.f32 %v176, 0.6931472
    %v178 = vadd.f32 %v170, %v177
    %v179 = vadd.f32 %v169, %v178
    %v180 = vsel %vm156, %v179, 0.0
    %s181 = sld [smem:[#allocation7]]
    %vm182 = vcmask 57344
    %v183 = vsel %vm182, %v180, 0.0
    %184 = vadd.xlane.f32.xlu0 %v183
    %v185 = vpop.xlane.xlu0 %184
    %v186 = vrot.slane %v185, 4
    %v187 = vadd.f32 %v185, %v186
    %v188 = vrot.slane %v187, 2
    %v189 = vadd.f32 %v187, %v188
    %v190 = vrot.slane %v189, 1
    %v191 = vadd.f32 %v189, %v190
    %s192 = vtos %v191
    %s193 = smul.f32 %s192, 0.125
    %s194 = sadd.f32 %s181, %s193
    %s195 = scalar_lea.smem [#allocation7], 0
    %196 = sst [smem:[%s195]] %s194
    // Predicated region
    $region34: #{tpu_custom_call.1} parent=1 // pred_check
      _
    $region35: #{tpu_custom_call.1} parent=1 // pred_check_branch
      %198 = sbr.rel (0) target = $region37
    $region36: #{tpu_custom_call.1} parent=1 // pred_region
      %200 = vsyncadd [#allocation4], 0
      %s202 = sshll.u32 %s5, 4
      %s203 = int_to_ptr.hbm [resolvable:$true] %s202
      %205 = dma.smem_to_hbm [#allocation7], 16, %s203, [#allocation4]
    $region37: #{tpu_custom_call.1} parent=1 // pred_fallthru
      _
    // Predicated region
    $region38: #{tpu_custom_call.1} parent=1 // pred_check
      _
    $region39: #{tpu_custom_call.1} parent=1 // pred_check_branch
      %207 = sbr.rel (0) target = $region41
    $region40: #{tpu_custom_call.1} parent=1 // pred_region
      %209 = dma.done [#allocation4], 16
    $region41: #{tpu_custom_call.1} parent=1 // pred_fallthru
      _
    %210 = sfence
    %211 = vsyncpa [#allocation3], 1
    %212 = vsyncpa [#allocation6], 1
    %213 = vsyncpa [#allocation4], 1

</llo_original>
